<compile_context>
chip_gen: v5e
topology: v5e:2x2
jax: 0.10.0
libtpu: 0.0.40
codegen_flags: <defaults>
</compile_context>

<pallas_src>
import numpy as np
import jax
import jax.numpy as jnp
from jax.experimental import pallas as pl
from jax.experimental.pallas import tpu as pltpu

LANES = 128
SUBLANES = 8


def _round_up(x, m):
    return ((x + m - 1) // m) * m


# ----------------------------------------------------------------------------
# Basis construction (numpy, identical to the PyTorch module's buffers)
# ----------------------------------------------------------------------------
def linspace_np(backcast_length, forecast_length):
    lin_space = np.linspace(
        -backcast_length, forecast_length,
        backcast_length + forecast_length, dtype=np.float32)
    return lin_space[:backcast_length], lin_space[backcast_length:]


def seasonal_basis(thetas_dim, b_ls, f_ls):
    p1, p2 = ((thetas_dim // 2, thetas_dim // 2) if thetas_dim % 2 == 0
              else (thetas_dim // 2, thetas_dim // 2 + 1))
    s_b = np.concatenate(
        [np.stack([np.cos(2 * np.pi * i * b_ls) for i in range(p1)]),
         np.stack([np.sin(2 * np.pi * i * b_ls) for i in range(p2)])]
    ).astype(np.float32)
    s_f = np.concatenate(
        [np.stack([np.cos(2 * np.pi * i * f_ls) for i in range(p1)]),
         np.stack([np.sin(2 * np.pi * i * f_ls) for i in range(p2)])]
    ).astype(np.float32)
    return s_b, s_f


def trend_basis(thetas_dim, b_ls, f_ls):
    t_b = np.stack([b_ls ** i for i in range(thetas_dim)]).astype(np.float32)
    t_f = np.stack([f_ls ** i for i in range(thetas_dim)]).astype(np.float32)
    return t_b, t_f


# ----------------------------------------------------------------------------
# Host-side weight packing: one lane-dense (rows, 128) f32 slab
# ----------------------------------------------------------------------------
class SlabPacker:
    def __init__(self):
        self._entries = []   # (np matrix, row offset)
        self._rows = 0

    def add(self, mat):
        mat = np.asarray(mat, np.float32)
        assert mat.ndim == 2 and mat.shape[1] <= LANES
        off = self._rows
        self._rows += _round_up(mat.shape[0], SUBLANES)
        self._entries.append((mat, off))
        return off

    def finalize(self):
        slab = np.zeros((max(self._rows, SUBLANES), LANES), np.float32)
        for mat, off in self._entries:
            slab[off:off + mat.shape[0], :mat.shape[1]] = mat
        return jnp.asarray(slab)


# ----------------------------------------------------------------------------
# Fused Pallas kernel: all blocks + residual bookkeeping + sMAPE loss
# ----------------------------------------------------------------------------
def make_fused_kernel(blocks, context_length, prediction_length,
                      batch, padded_batch):
    """blocks: list of static per-block metadata dicts describing slab slices.

    Weight slices are (offset, rows, cols); biases are (offset, cols).
    All offsets are multiples of 8, all loads start at lane 0.
    """
    n_blocks = len(blocks)

    def kernel(past_ref, future_ref, w_ref, out_ref):
        def load(entry):
            off, rows, cols = entry
            return w_ref[off:off + rows, :cols]

        def load_bias(entry):
            off, cols = entry
            return w_ref[off:off + 1, :cols]

        backcast = past_ref[...]          # running residual, stays in vregs
        forecast = None

        for bi, m in enumerate(blocks):
            # ---- FC stack ----
            h = backcast
            for (w_e, b_e) in m["fc"]:
                h = jnp.maximum(
                    jnp.dot(h, load(w_e), preferred_element_type=jnp.float32)
                    + load_bias(b_e), 0.0)

            # ---- theta projection ----
            if m["stype"] == "G":
                # Generic block: separate theta_b / theta_f, ReLU on thetas.
                theta_b = jnp.maximum(
                    jnp.dot(h, load(m["theta_b"]),
                            preferred_element_type=jnp.float32), 0.0)
                theta_f = jnp.maximum(
                    jnp.dot(h, load(m["theta_f"]),
                            preferred_element_type=jnp.float32), 0.0)
            else:
                # Seasonal / trend: share_thetas=True, bias-free, no ReLU.
                theta_b = theta_f = jnp.dot(
                    h, load(m["theta_b"]), preferred_element_type=jnp.float32)

            # ---- basis projections (separate matmuls, no lane split) ----
            b_out = jnp.dot(theta_b, load(m["back_w"]),
                            preferred_element_type=jnp.float32)
            if m["back_b"] is not None:
                b_out = b_out + load_bias(m["back_b"])
            f_out = jnp.dot(theta_f, load(m["fore_w"]),
                            preferred_element_type=jnp.float32)
            if m["fore_b"] is not None:
                f_out = f_out + load_bias(m["fore_b"])

            # ---- residual bookkeeping (matches NBEATSNetwork.forward) ----
            if n_blocks == 1:
                forecast = f_out
            elif bi == 0:
                backcast = backcast - b_out
                forecast = f_out
            elif bi < n_blocks - 1:
                backcast = backcast - b_out
                forecast = forecast + f_out
            else:  # last block: its backcast is unused
                forecast = forecast + f_out

        # ---- sMAPE loss: 200/pred * mean(dim=1), then mean over batch ----
        ft = future_ref[...]
        denom = jnp.abs(ft) + jnp.abs(forecast)
        flag = (denom == 0.0).astype(jnp.float32)
        per = jnp.abs(ft - forecast) * (1.0 - flag) / (denom + flag)
        if padded_batch != batch:   # mask zero-padded batch rows (static check)
            row = jax.lax.broadcasted_iota(jnp.int32, per.shape, 0)
            per = per * (row < batch).astype(jnp.float32)
        scale = 200.0 / (prediction_length * prediction_length * batch)
        out_ref[...] = jnp.sum(per, keepdims=True) * scale

    return kernel


def nbeats_training_loss(past_target, future_target, weight_slab, blocks,
                         context_length, prediction_length):
    batch = past_target.shape[0]
    padded_batch = max(_round_up(batch, SUBLANES), SUBLANES)
    if padded_batch != batch:
        pad = padded_batch - batch
        past_target = jnp.pad(past_target, ((0, pad), (0, 0)))
        future_target = jnp.pad(future_target, ((0, pad), (0, 0)))

    vmem = pl.BlockSpec(memory_space=pltpu.MemorySpace.VMEM)
    out = pl.pallas_call(
        make_fused_kernel(blocks, context_length, prediction_length,
                          batch, padded_batch),
        out_shape=jax.ShapeDtypeStruct((1, 1), jnp.float32),
        in_specs=[vmem, vmem, vmem],
        out_specs=vmem,
    )(past_target, future_target, weight_slab)
    return out[0, 0]


# ----------------------------------------------------------------------------
# Parameter construction (deterministic, synthetic) + slab packing
# ----------------------------------------------------------------------------
def build_model(key, *, context_length, prediction_length, num_stacks,
                widths, num_blocks, num_block_layers,
                expansion_coefficient_lengths, stack_types):
    b_ls, f_ls = linspace_np(context_length, prediction_length)
    packer = SlabPacker()
    blocks = []
    scale = 0.1

    def rand(key, shape):
        key, k = jax.random.split(key)
        return key, np.asarray(jax.random.normal(k, shape, jnp.float32)) * scale

    for stack_id in range(num_stacks):
        for _ in range(num_blocks[stack_id]):
            units = widths[stack_id]
            nlay = num_block_layers[stack_id]
            stype = stack_types[stack_id]

            # FC stack: Linear(ctx, units)+ReLU, then (nlay-1)x Linear(units, units)+ReLU
            fc = []
            in_dim = context_length
            for _ in range(nlay):
                key, w = rand(key, (in_dim, units))
                key, b = rand(key, (1, units))
                fc.append(((packer.add(w), in_dim, units),
                           (packer.add(b), units)))
                in_dim = units

            if stype == "G":
                td = expansion_coefficient_lengths[stack_id]
                td_pad = _round_up(td, SUBLANES)
                key, tbw = rand(key, (units, td))
                key, tfw = rand(key, (units, td))
                key, back_w = rand(key, (td, context_length))
                key, back_b = rand(key, (1, context_length))
                key, fore_w = rand(key, (td, prediction_length))
                key, fore_b = rand(key, (1, prediction_length))
                meta = dict(
                    stype="G", fc=fc,
                    theta_b=(packer.add(tbw), units, td_pad),
                    theta_f=(packer.add(tfw), units, td_pad),
                    back_w=(packer.add(back_w), td_pad, context_length),
                    back_b=(packer.add(back_b), context_length),
                    fore_w=(packer.add(fore_w), td_pad, prediction_length),
                    fore_b=(packer.add(fore_b), prediction_length),
                )
            else:
                if stype == "S":
                    td = prediction_length   # nb_harmonics=None
                    s_b, s_f = seasonal_basis(td, b_ls, f_ls)
                else:                        # "T" trend
                    td = expansion_coefficient_lengths[stack_id]
                    s_b, s_f = trend_basis(td, b_ls, f_ls)
                td_pad = _round_up(td, SUBLANES)
                key, tw = rand(key, (units, td))  # shared, bias-free theta fc
                theta_entry = (packer.add(tw), units, td_pad)
                meta = dict(
                    stype=stype, fc=fc,
                    theta_b=theta_entry, theta_f=theta_entry,
                    back_w=(packer.add(s_b), td_pad, context_length),
                    back_b=None,
                    fore_w=(packer.add(s_f), td_pad, prediction_length),
                    fore_b=None,
                )
            blocks.append(meta)

    return packer.finalize(), blocks


# ----------------------------------------------------------------------------
# Main
# ----------------------------------------------------------------------------
if __name__ == "__main__":
    context_length = 16
    prediction_length = 8
    batch = 8   # sublane-aligned per perf feedback

    cfg = dict(
        context_length=context_length,
        prediction_length=prediction_length,
        num_stacks=3,
        widths=[32, 32, 32],
        num_blocks=[1, 1, 1],
        num_block_layers=[2, 2, 2],
        expansion_coefficient_lengths=[4, 8, 3],
        stack_types=["G", "S", "T"],
    )

    key = jax.random.PRNGKey(0)
    key, k_blocks, k_past, k_future = jax.random.split(key, 4)
    weight_slab, blocks = build_model(k_blocks, **cfg)

    past_target = jax.random.normal(
        k_past, (batch, context_length), jnp.float32)
    future_target = jax.random.normal(
        k_future, (batch, prediction_length), jnp.float32)

    @jax.jit
    def loss_fn(pt, ft, slab):
        return nbeats_training_loss(
            pt, ft, slab, blocks, context_length, prediction_length)

    loss = loss_fn(past_target, future_target, weight_slab)
    jax.block_until_ready(loss)
    print("KERNEL_OK")
</pallas_src>

<mosaic_0001>
module attributes {stable_mosaic.version = 11 : i64} {
  func.func @kernel(%arg0: memref<8x16xf32, #tpu.memory_space<vmem>>, %arg1: memref<8x8xf32, #tpu.memory_space<vmem>>, %arg2: memref<384x128xf32, #tpu.memory_space<vmem>>, %arg3: memref<1x1xf32, #tpu.memory_space<vmem>>) attributes {dimension_semantics = [], scalar_prefetch = 0 : i64, scratch_operands = 0 : i64, tpu.core_type = #tpu.core_type<tc>} {
    %c0 = arith.constant 0 : index
    %c0_0 = arith.constant 0 : index
    %0 = vector.load %arg0[%c0, %c0_0] : memref<8x16xf32, #tpu.memory_space<vmem>>, vector<8x16xf32>
    %c0_1 = arith.constant 0 : index
    %c0_2 = arith.constant 0 : index
    %1 = vector.load %arg2[%c0_1, %c0_2] : memref<384x128xf32, #tpu.memory_space<vmem>>, vector<16x32xf32>
    %cst = arith.constant dense<0.000000e+00> : vector<8x32xf32>
    %2 = tpu.matmul %0, %1, %cst {dimension_numbers = #tpu.dot_dimension_numbers<[1], [0], [0], [1], [0, 0, 1, 1], [], []>} : vector<8x16xf32>, vector<16x32xf32>, vector<8x32xf32> -> vector<8x32xf32>
    %c16 = arith.constant 16 : index
    %c0_3 = arith.constant 0 : index
    %3 = vector.load %arg2[%c16, %c0_3] : memref<384x128xf32, #tpu.memory_space<vmem>>, vector<1x32xf32>
    %4 = vector.broadcast %3 : vector<1x32xf32> to vector<8x32xf32>
    %5 = arith.addf %2, %4 : vector<8x32xf32>
    %cst_4 = arith.constant 0.000000e+00 : f32
    %6 = vector.broadcast %cst_4 : f32 to vector<8x32xf32>
    %7 = arith.maximumf %5, %6 : vector<8x32xf32>
    %c24 = arith.constant 24 : index
    %c0_5 = arith.constant 0 : index
    %8 = vector.load %arg2[%c24, %c0_5] : memref<384x128xf32, #tpu.memory_space<vmem>>, vector<32x32xf32>
    %cst_6 = arith.constant dense<0.000000e+00> : vector<8x32xf32>
    %9 = tpu.matmul %7, %8, %cst_6 {dimension_numbers = #tpu.dot_dimension_numbers<[1], [0], [0], [1], [0, 0, 1, 1], [], []>} : vector<8x32xf32>, vector<32x32xf32>, vector<8x32xf32> -> vector<8x32xf32>
    %c56 = arith.constant 56 : index
    %c0_7 = arith.constant 0 : index
    %10 = vector.load %arg2[%c56, %c0_7] : memref<384x128xf32, #tpu.memory_space<vmem>>, vector<1x32xf32>
    %11 = vector.broadcast %10 : vector<1x32xf32> to vector<8x32xf32>
    %12 = arith.addf %9, %11 : vector<8x32xf32>
    %cst_8 = arith.constant 0.000000e+00 : f32
    %13 = vector.broadcast %cst_8 : f32 to vector<8x32xf32>
    %14 = arith.maximumf %12, %13 : vector<8x32xf32>
    %c64 = arith.constant 64 : index
    %c0_9 = arith.constant 0 : index
    %15 = vector.load %arg2[%c64, %c0_9] : memref<384x128xf32, #tpu.memory_space<vmem>>, vector<32x8xf32>
    %cst_10 = arith.constant dense<0.000000e+00> : vector<8x8xf32>
    %16 = tpu.matmul %14, %15, %cst_10 {dimension_numbers = #tpu.dot_dimension_numbers<[1], [0], [0], [1], [0, 0, 1, 1], [], []>} : vector<8x32xf32>, vector<32x8xf32>, vector<8x8xf32> -> vector<8x8xf32>
    %cst_11 = arith.constant 0.000000e+00 : f32
    %17 = vector.broadcast %cst_11 : f32 to vector<8x8xf32>
    %18 = arith.maximumf %16, %17 : vector<8x8xf32>
    %c96 = arith.constant 96 : index
    %c0_12 = arith.constant 0 : index
    %19 = vector.load %arg2[%c96, %c0_12] : memref<384x128xf32, #tpu.memory_space<vmem>>, vector<32x8xf32>
    %cst_13 = arith.constant dense<0.000000e+00> : vector<8x8xf32>
    %20 = tpu.matmul %14, %19, %cst_13 {dimension_numbers = #tpu.dot_dimension_numbers<[1], [0], [0], [1], [0, 0, 1, 1], [], []>} : vector<8x32xf32>, vector<32x8xf32>, vector<8x8xf32> -> vector<8x8xf32>
    %cst_14 = arith.constant 0.000000e+00 : f32
    %21 = vector.broadcast %cst_14 : f32 to vector<8x8xf32>
    %22 = arith.maximumf %20, %21 : vector<8x8xf32>
    %c128 = arith.constant 128 : index
    %c0_15 = arith.constant 0 : index
    %23 = vector.load %arg2[%c128, %c0_15] : memref<384x128xf32, #tpu.memory_space<vmem>>, vector<8x16xf32>
    %cst_16 = arith.constant dense<0.000000e+00> : vector<8x16xf32>
    %24 = tpu.matmul %18, %23, %cst_16 {dimension_numbers = #tpu.dot_dimension_numbers<[1], [0], [0], [1], [0, 0, 1, 1], [], []>} : vector<8x8xf32>, vector<8x16xf32>, vector<8x16xf32> -> vector<8x16xf32>
    %c136 = arith.constant 136 : index
    %c0_17 = arith.constant 0 : index
    %25 = vector.load %arg2[%c136, %c0_17] : memref<384x128xf32, #tpu.memory_space<vmem>>, vector<1x16xf32>
    %26 = vector.broadcast %25 : vector<1x16xf32> to vector<8x16xf32>
    %27 = arith.addf %24, %26 : vector<8x16xf32>
    %c144 = arith.constant 144 : index
    %c0_18 = arith.constant 0 : index
    %28 = vector.load %arg2[%c144, %c0_18] : memref<384x128xf32, #tpu.memory_space<vmem>>, vector<8x8xf32>
    %cst_19 = arith.constant dense<0.000000e+00> : vector<8x8xf32>
    %29 = tpu.matmul %22, %28, %cst_19 {dimension_numbers = #tpu.dot_dimension_numbers<[1], [0], [0], [1], [0, 0, 1, 1], [], []>} : vector<8x8xf32>, vector<8x8xf32>, vector<8x8xf32> -> vector<8x8xf32>
    %c152 = arith.constant 152 : index
    %c0_20 = arith.constant 0 : index
    %30 = vector.load %arg2[%c152, %c0_20] : memref<384x128xf32, #tpu.memory_space<vmem>>, vector<1x8xf32>
    %31 = vector.broadcast %30 : vector<1x8xf32> to vector<8x8xf32>
    %32 = arith.addf %29, %31 : vector<8x8xf32>
    %33 = arith.subf %0, %27 : vector<8x16xf32>
    %c160 = arith.constant 160 : index
    %c0_21 = arith.constant 0 : index
    %34 = vector.load %arg2[%c160, %c0_21] : memref<384x128xf32, #tpu.memory_space<vmem>>, vector<16x32xf32>
    %cst_22 = arith.constant dense<0.000000e+00> : vector<8x32xf32>
    %35 = tpu.matmul %33, %34, %cst_22 {dimension_numbers = #tpu.dot_dimension_numbers<[1], [0], [0], [1], [0, 0, 1, 1], [], []>} : vector<8x16xf32>, vector<16x32xf32>, vector<8x32xf32> -> vector<8x32xf32>
    %c176 = arith.constant 176 : index
    %c0_23 = arith.constant 0 : index
    %36 = vector.load %arg2[%c176, %c0_23] : memref<384x128xf32, #tpu.memory_space<vmem>>, vector<1x32xf32>
    %37 = vector.broadcast %36 : vector<1x32xf32> to vector<8x32xf32>
    %38 = arith.addf %35, %37 : vector<8x32xf32>
    %cst_24 = arith.constant 0.000000e+00 : f32
    %39 = vector.broadcast %cst_24 : f32 to vector<8x32xf32>
    %40 = arith.maximumf %38, %39 : vector<8x32xf32>
    %c184 = arith.constant 184 : index
    %c0_25 = arith.constant 0 : index
    %41 = vector.load %arg2[%c184, %c0_25] : memref<384x128xf32, #tpu.memory_space<vmem>>, vector<32x32xf32>
    %cst_26 = arith.constant dense<0.000000e+00> : vector<8x32xf32>
    %42 = tpu.matmul %40, %41, %cst_26 {dimension_numbers = #tpu.dot_dimension_numbers<[1], [0], [0], [1], [0, 0, 1, 1], [], []>} : vector<8x32xf32>, vector<32x32xf32>, vector<8x32xf32> -> vector<8x32xf32>
    %c216 = arith.constant 216 : index
    %c0_27 = arith.constant 0 : index
    %43 = vector.load %arg2[%c216, %c0_27] : memref<384x128xf32, #tpu.memory_space<vmem>>, vector<1x32xf32>
    %44 = vector.broadcast %43 : vector<1x32xf32> to vector<8x32xf32>
    %45 = arith.addf %42, %44 : vector<8x32xf32>
    %cst_28 = arith.constant 0.000000e+00 : f32
    %46 = vector.broadcast %cst_28 : f32 to vector<8x32xf32>
    %47 = arith.maximumf %45, %46 : vector<8x32xf32>
    %c224 = arith.constant 224 : index
    %c0_29 = arith.constant 0 : index
    %48 = vector.load %arg2[%c224, %c0_29] : memref<384x128xf32, #tpu.memory_space<vmem>>, vector<32x8xf32>
    %cst_30 = arith.constant dense<0.000000e+00> : vector<8x8xf32>
    %49 = tpu.matmul %47, %48, %cst_30 {dimension_numbers = #tpu.dot_dimension_numbers<[1], [0], [0], [1], [0, 0, 1, 1], [], []>} : vector<8x32xf32>, vector<32x8xf32>, vector<8x8xf32> -> vector<8x8xf32>
    %c256 = arith.constant 256 : index
    %c0_31 = arith.constant 0 : index
    %50 = vector.load %arg2[%c256, %c0_31] : memref<384x128xf32, #tpu.memory_space<vmem>>, vector<8x16xf32>
    %cst_32 = arith.constant dense<0.000000e+00> : vector<8x16xf32>
    %51 = tpu.matmul %49, %50, %cst_32 {dimension_numbers = #tpu.dot_dimension_numbers<[1], [0], [0], [1], [0, 0, 1, 1], [], []>} : vector<8x8xf32>, vector<8x16xf32>, vector<8x16xf32> -> vector<8x16xf32>
    %c264 = arith.constant 264 : index
    %c0_33 = arith.constant 0 : index
    %52 = vector.load %arg2[%c264, %c0_33] : memref<384x128xf32, #tpu.memory_space<vmem>>, vector<8x8xf32>
    %cst_34 = arith.constant dense<0.000000e+00> : vector<8x8xf32>
    %53 = tpu.matmul %49, %52, %cst_34 {dimension_numbers = #tpu.dot_dimension_numbers<[1], [0], [0], [1], [0, 0, 1, 1], [], []>} : vector<8x8xf32>, vector<8x8xf32>, vector<8x8xf32> -> vector<8x8xf32>
    %54 = arith.subf %33, %51 : vector<8x16xf32>
    %55 = arith.addf %32, %53 : vector<8x8xf32>
    %c272 = arith.constant 272 : index
    %c0_35 = arith.constant 0 : index
    %56 = vector.load %arg2[%c272, %c0_35] : memref<384x128xf32, #tpu.memory_space<vmem>>, vector<16x32xf32>
    %cst_36 = arith.constant dense<0.000000e+00> : vector<8x32xf32>
    %57 = tpu.matmul %54, %56, %cst_36 {dimension_numbers = #tpu.dot_dimension_numbers<[1], [0], [0], [1], [0, 0, 1, 1], [], []>} : vector<8x16xf32>, vector<16x32xf32>, vector<8x32xf32> -> vector<8x32xf32>
    %c288 = arith.constant 288 : index
    %c0_37 = arith.constant 0 : index
    %58 = vector.load %arg2[%c288, %c0_37] : memref<384x128xf32, #tpu.memory_space<vmem>>, vector<1x32xf32>
    %59 = vector.broadcast %58 : vector<1x32xf32> to vector<8x32xf32>
    %60 = arith.addf %57, %59 : vector<8x32xf32>
    %cst_38 = arith.constant 0.000000e+00 : f32
    %61 = vector.broadcast %cst_38 : f32 to vector<8x32xf32>
    %62 = arith.maximumf %60, %61 : vector<8x32xf32>
    %c296 = arith.constant 296 : index
    %c0_39 = arith.constant 0 : index
    %63 = vector.load %arg2[%c296, %c0_39] : memref<384x128xf32, #tpu.memory_space<vmem>>, vector<32x32xf32>
    %cst_40 = arith.constant dense<0.000000e+00> : vector<8x32xf32>
    %64 = tpu.matmul %62, %63, %cst_40 {dimension_numbers = #tpu.dot_dimension_numbers<[1], [0], [0], [1], [0, 0, 1, 1], [], []>} : vector<8x32xf32>, vector<32x32xf32>, vector<8x32xf32> -> vector<8x32xf32>
    %c328 = arith.constant 328 : index
    %c0_41 = arith.constant 0 : index
    %65 = vector.load %arg2[%c328, %c0_41] : memref<384x128xf32, #tpu.memory_space<vmem>>, vector<1x32xf32>
    %66 = vector.broadcast %65 : vector<1x32xf32> to vector<8x32xf32>
    %67 = arith.addf %64, %66 : vector<8x32xf32>
    %cst_42 = arith.constant 0.000000e+00 : f32
    %68 = vector.broadcast %cst_42 : f32 to vector<8x32xf32>
    %69 = arith.maximumf %67, %68 : vector<8x32xf32>
    %c336 = arith.constant 336 : index
    %c0_43 = arith.constant 0 : index
    %70 = vector.load %arg2[%c336, %c0_43] : memref<384x128xf32, #tpu.memory_space<vmem>>, vector<32x8xf32>
    %cst_44 = arith.constant dense<0.000000e+00> : vector<8x8xf32>
    %71 = tpu.matmul %69, %70, %cst_44 {dimension_numbers = #tpu.dot_dimension_numbers<[1], [0], [0], [1], [0, 0, 1, 1], [], []>} : vector<8x32xf32>, vector<32x8xf32>, vector<8x8xf32> -> vector<8x8xf32>
    %c376 = arith.constant 376 : index
    %c0_45 = arith.constant 0 : index
    %72 = vector.load %arg2[%c376, %c0_45] : memref<384x128xf32, #tpu.memory_space<vmem>>, vector<8x8xf32>
    %cst_46 = arith.constant dense<0.000000e+00> : vector<8x8xf32>
    %73 = tpu.matmul %71, %72, %cst_46 {dimension_numbers = #tpu.dot_dimension_numbers<[1], [0], [0], [1], [0, 0, 1, 1], [], []>} : vector<8x8xf32>, vector<8x8xf32>, vector<8x8xf32> -> vector<8x8xf32>
    %74 = arith.addf %55, %73 : vector<8x8xf32>
    %c0_47 = arith.constant 0 : index
    %c0_48 = arith.constant 0 : index
    %75 = vector.load %arg1[%c0_47, %c0_48] : memref<8x8xf32, #tpu.memory_space<vmem>>, vector<8x8xf32>
    %76 = math.absf %75 : vector<8x8xf32>
    %77 = math.absf %74 : vector<8x8xf32>
    %78 = arith.addf %76, %77 : vector<8x8xf32>
    %cst_49 = arith.constant 0.000000e+00 : f32
    %79 = vector.broadcast %cst_49 : f32 to vector<8x8xf32>
    %80 = arith.cmpf oeq, %78, %79 : vector<8x8xf32>
    %81 = arith.extui %80 : vector<8x8xi1> to vector<8x8xi32>
    %82 = arith.sitofp %81 : vector<8x8xi32> to vector<8x8xf32>
    %83 = arith.subf %75, %74 : vector<8x8xf32>
    %84 = math.absf %83 : vector<8x8xf32>
    %cst_50 = arith.constant 1.000000e+00 : f32
    %85 = vector.broadcast %cst_50 : f32 to vector<8x8xf32>
    %86 = arith.subf %85, %82 : vector<8x8xf32>
    %87 = arith.mulf %84, %86 : vector<8x8xf32>
    %88 = arith.addf %78, %82 : vector<8x8xf32>
    %89 = arith.divf %87, %88 : vector<8x8xf32>
    %90 = vector.shape_cast %89 : vector<8x8xf32> to vector<1x8x8xf32>
    %cst_51 = arith.constant dense<0.000000e+00> : vector<1xf32>
    %91 = vector.multi_reduction <add>, %90, %cst_51 [1, 2] : vector<1x8x8xf32> to vector<1xf32>
    %92 = vector.shape_cast %91 : vector<1xf32> to vector<1x1x1xf32>
    %93 = vector.extract %92[0, 0, 0] : f32 from vector<1x1x1xf32>
    %94 = vector.broadcast %93 : f32 to vector<1x1xf32>
    %cst_52 = arith.constant 3.906250e-01 : f32
    %95 = vector.broadcast %cst_52 : f32 to vector<1x1xf32>
    %96 = arith.mulf %94, %95 : vector<1x1xf32>
    %c0_53 = arith.constant 0 : index
    %c0_54 = arith.constant 0 : index
    %97 = vector.load %arg3[%c0_53, %c0_54] : memref<1x1xf32, #tpu.memory_space<vmem>>, vector<1x1xf32>
    tpu.vector_store %arg3[%c0_53, %c0_54], %96 {strides = array<i32>} : memref<1x1xf32, #tpu.memory_space<vmem>>, vector<1x1xf32>,
    return
  }
}

</mosaic_0001>

<llo_original>
// kernel: loss_fn.1
$region0: #{loss_fn.1}
  #allocation0 [shape = 'u32[]', space=smem, size = 0x4, offset = 0x4, fixed_abs, tag = 'smem constant byte address 0x4 - core index']
  #allocation1 [shape = 'u32[72,128]{1,0:T(1,128)}', space=vmem, size = 0x9000, scoped, tag = 'internal scratch']
  %s0 = inlined_call_operand.hbm [shape: f32[8,16], index: 0, kind: input, shape index: {}]
  %s1 = inlined_call_operand.hbm [shape: f32[8,8], index: 1, kind: input, shape index: {}]
  %s2 = inlined_call_operand.hbm [shape: f32[384,128], index: 2, kind: input, shape index: {}]
  %s3 = inlined_call_operand.hbm [shape: f32[1,1], index: 3, kind: output, shape index: {}]
  %s4 = sld [smem:[#allocation0]]
  $region34: #{loss_fn.1} parent=0
    _
  %s6 = ssub.s32 1, %s4
  %s7 = scalar_select 0, %s6, %s4
  $region1: #{loss_fn.1} parent=0
    #allocation2 [shape = 'u8[4096]{0}', space=vmem, size = 0x1000, scoped, tag = 'input window, operand 0, single buffered']
    #allocation3 [shape = 's32[1]{0}', space=sflag, size = 0x4, scoped, tag = 'scoped memory for loss_fn.1']
    #allocation4 [shape = 's32[1]{0}', space=sflag, size = 0x4, scoped, tag = 'scoped memory for loss_fn.1']
    #allocation5 [shape = 'u8[4096]{0}', space=vmem, size = 0x1000, scoped, tag = 'input window, operand 1, single buffered']
    #allocation6 [shape = 's32[1]{0}', space=sflag, size = 0x4, scoped, tag = 'scoped memory for loss_fn.1']
    #allocation7 [shape = 'u8[196608]{0}', space=vmem, size = 0x30000, scoped, tag = 'input window, operand 2, single buffered']
    #allocation8 [shape = 'u8[512]{0}', space=vmem, size = 0x400, scoped, tag = 'output window, operand 0, single buffered']
    %8 = vsyncpa [#allocation3], 0
    %9 = vsyncpa [#allocation6], 0
    %10 = vsyncpa [#allocation4], 0
    // Predicated region
    $region2: #{loss_fn.1} parent=1 // pred_check
      _
    $region3: #{loss_fn.1} parent=1 // pred_check_branch
      %12 = sbr.rel (0) target = $region5
    $region4: #{loss_fn.1} parent=1 // pred_region
      %14 = vsyncadd [#allocation3], 0
      %s16 = sshll.u32 %s0, 4
      %s17 = int_to_ptr.hbm [resolvable:$true] %s16
      %s18 = sshll.u32 [#allocation2], 4
      %s19 = int_to_ptr.vmem [resolvable:$true] %s18
      %21 = dma.hbm_to_vmem [thread:$0]  %s17, 128, %s19, [#allocation3]
    $region5: #{loss_fn.1} parent=1 // pred_fallthru
      _
    // Predicated region
    $region6: #{loss_fn.1} parent=1 // pred_check
      _
    $region7: #{loss_fn.1} parent=1 // pred_check_branch
      %23 = sbr.rel (0) target = $region9
    $region8: #{loss_fn.1} parent=1 // pred_region
      %25 = vsyncadd [#allocation6], 0
      %s27 = sshll.u32 %s1, 4
      %s28 = int_to_ptr.hbm [resolvable:$true] %s27
      %s29 = sshll.u32 [#allocation5], 4
      %s30 = int_to_ptr.vmem [resolvable:$true] %s29
      %32 = dma.hbm_to_vmem [thread:$0]  %s28, 128, %s30, [#allocation6]
    $region9: #{loss_fn.1} parent=1 // pred_fallthru
      _
    // Predicated region
    $region10: #{loss_fn.1} parent=1 // pred_check
      _
    $region11: #{loss_fn.1} parent=1 // pred_check_branch
      %34 = sbr.rel (0) target = $region13
    $region12: #{loss_fn.1} parent=1 // pred_region
      %36 = vsyncadd [#allocation6], 0
      %s37 = sshll.u32 %s2, 4
      %s38 = int_to_ptr.hbm [resolvable:$true] %s37
      %s39 = sshll.u32 [#allocation7], 4
      %s40 = int_to_ptr.vmem [resolvable:$true] %s39
      %45 = dma.hbm_to_vmem [thread:$0]  %s38, 6144, %s40, [#allocation6], 128, 128, 8
    $region13: #{loss_fn.1} parent=1 // pred_fallthru
      _
    // Predicated region
    $region14: #{loss_fn.1} parent=1 // pred_check
      _
    $region15: #{loss_fn.1} parent=1 // pred_check_branch
      %47 = sbr.rel (0) target = $region17
    $region16: #{loss_fn.1} parent=1 // pred_region
      %49 = dma.done [#allocation3], 128
    $region17: #{loss_fn.1} parent=1 // pred_fallthru
      _
    // Predicated region
    $region18: #{loss_fn.1} parent=1 // pred_check
      _
    $region19: #{loss_fn.1} parent=1 // pred_check_branch
      %51 = sbr.rel (0) target = $region21
    $region20: #{loss_fn.1} parent=1 // pred_region
      %53 = dma.done [#allocation6], 128
    $region21: #{loss_fn.1} parent=1 // pred_fallthru
      _
    // Predicated region
    $region22: #{loss_fn.1} parent=1 // pred_check
      _
    $region23: #{loss_fn.1} parent=1 // pred_check_branch
      %55 = sbr.rel (0) target = $region25
    $region24: #{loss_fn.1} parent=1 // pred_region
      %57 = dma.done [#allocation6], 6144
    $region25: #{loss_fn.1} parent=1 // pred_fallthru
      _
    %v58 = vld [vmem:[#allocation2] sm:$0xff]
    %v59 = vld [vmem:[#allocation7] sm:$0xff]
    %v60 = vld [vmem:[#allocation7 + $0x8] sm:$0xff]
    %v61 = vld [vmem:[#allocation7 + $0x10] sm:$0x1]
    %v62 = vperm.slane %v61, 0
    %vm63 = vcmask 130048
    %v65 = vsel %vm63, %v58, 0
    %67 = vmatpush.msra.mxu0 0.0
    %68 = vmatpush.msra.mxu0 0.0
    %69 = vmatpush.msra.mxu0 0.0
    %70 = vmatpush.msra.mxu0 0.0
    %71 = vmatpush.msra.mxu0 0.0
    %72 = vmatpush.msra.mxu0 0.0
    %73 = vmatpush.msra.mxu0 0.0
    %74 = vmatpush.msra.mxu0 0.0
    %75 = vmatpush.msra.mxu0 0.0
    %76 = vmatpush.msra.mxu0 0.0
    %77 = vmatpush.msra.mxu0 0.0
    %78 = vmatpush.msra.mxu0 0.0
    %79 = vmatpush.msra.mxu0 0.0
    %80 = vmatpush.msra.mxu0 0.0
    %81 = vmatpush.msra.mxu0 %v60
    %82 = vmatpush.msra.mxu0 %v59
    %83 = vmatmul.f32.gmra.mxu0 %v65
    %v84 = vpop.f32.mrf.mxu0
    %v85 = vadd.f32 %v62, %v84
    %86 = vdwg.mxu0
    %v87 = vmax.f32 %v85, 0.0
    %v88 = vld [vmem:[#allocation7 + $0x18] sm:$0xff]
    %v89 = vld [vmem:[#allocation7 + $0x20] sm:$0xff]
    %v90 = vld [vmem:[#allocation7 + $0x28] sm:$0xff]
    %v91 = vld [vmem:[#allocation7 + $0x30] sm:$0xff]
    %v92 = vld [vmem:[#allocation7 + $0x38] sm:$0x1]
    %v93 = vperm.slane %v92, 0
    %vm94 = vcmask 261120
    %v96 = vsel %vm94, %v87, 0
    %98 = vmatpush.msra.mxu0 0.0
    %99 = vmatpush.msra.mxu0 0.0
    %100 = vmatpush.msra.mxu0 0.0
    %101 = vmatpush.msra.mxu0 0.0
    %102 = vmatpush.msra.mxu0 0.0
    %103 = vmatpush.msra.mxu0 0.0
    %104 = vmatpush.msra.mxu0 0.0
    %105 = vmatpush.msra.mxu0 0.0
    %106 = vmatpush.msra.mxu0 0.0
    %107 = vmatpush.msra.mxu0 0.0
    %108 = vmatpush.msra.mxu0 0.0
    %109 = vmatpush.msra.mxu0 0.0
    %110 = vmatpush.msra.mxu0 %v91
    %111 = vmatpush.msra.mxu0 %v90
    %112 = vmatpush.msra.mxu0 %v89
    %113 = vmatpush.msra.mxu0 %v88
    %114 = vmatmul.f32.gmra.mxu0 %v96
    %v115 = vpop.f32.mrf.mxu0
    %v116 = vadd.f32 %v93, %v115
    %117 = vdwg.mxu0
    %v118 = vmax.f32 %v116, 0.0
    %v119 = vld [vmem:[#allocation7 + $0x40] sm:$0xff]
    %v120 = vld [vmem:[#allocation7 + $0x48] sm:$0xff]
    %v121 = vld [vmem:[#allocation7 + $0x50] sm:$0xff]
    %v122 = vld [vmem:[#allocation7 + $0x58] sm:$0xff]
    %v124 = vsel %vm94, %v118, 0
    %126 = vmatpush.msra.mxu0 0.0
    %127 = vmatpush.msra.mxu0 0.0
    %128 = vmatpush.msra.mxu0 0.0
    %129 = vmatpush.msra.mxu0 0.0
    %130 = vmatpush.msra.mxu0 0.0
    %131 = vmatpush.msra.mxu0 0.0
    %132 = vmatpush.msra.mxu0 0.0
    %133 = vmatpush.msra.mxu0 0.0
    %134 = vmatpush.msra.mxu0 0.0
    %135 = vmatpush.msra.mxu0 0.0
    %136 = vmatpush.msra.mxu0 0.0
    %137 = vmatpush.msra.mxu0 0.0
    %138 = vmatpush.msra.mxu0 %v122
    %139 = vmatpush.msra.mxu0 %v121
    %140 = vmatpush.msra.mxu0 %v120
    %141 = vmatpush.msra.mxu0 %v119
    %142 = vmatmul.f32.gmra.mxu0 %v124
    %v143 = vpop.f32.mrf.mxu0
    %v144 = vadd.f32 0.0, %v143
    %145 = vdwg.mxu0
    %v146 = vmax.f32 %v144, 0.0
    %v147 = vld [vmem:[#allocation7 + $0x60] sm:$0xff]
    %v148 = vld [vmem:[#allocation7 + $0x68] sm:$0xff]
    %v149 = vld [vmem:[#allocation7 + $0x70] sm:$0xff]
    %v150 = vld [vmem:[#allocation7 + $0x78] sm:$0xff]
    %151 = vmatpush.msra.mxu0 0.0
    %152 = vmatpush.msra.mxu0 0.0
    %153 = vmatpush.msra.mxu0 0.0
    %154 = vmatpush.msra.mxu0 0.0
    %155 = vmatpush.msra.mxu0 0.0
    %156 = vmatpush.msra.mxu0 0.0
    %157 = vmatpush.msra.mxu0 0.0
    %158 = vmatpush.msra.mxu0 0.0
    %159 = vmatpush.msra.mxu0 0.0
    %160 = vmatpush.msra.mxu0 0.0
    %161 = vmatpush.msra.mxu0 0.0
    %162 = vmatpush.msra.mxu0 0.0
    %163 = vmatpush.msra.mxu0 %v150
    %164 = vmatpush.msra.mxu0 %v149
    %165 = vmatpush.msra.mxu0 %v148
    %166 = vmatpush.msra.mxu0 %v147
    %167 = vmatmul.f32.gmra.mxu0 %v124
    %v168 = vpop.f32.mrf.mxu0
    %v169 = vadd.f32 0.0, %v168
    %170 = vdwg.mxu0
    %v171 = vmax.f32 %v169, 0.0
    %v172 = vld [vmem:[#allocation7 + $0x80] sm:$0xff]
    %v173 = vld [vmem:[#allocation7 + $0x88] sm:$0x1]
    %v174 = vperm.slane %v173, 0
    %vm175 = vcmask 64512
    %v177 = vsel %vm175, %v146, 0
    %179 = vmatpush.msra.mxu0 0.0
    %180 = vmatpush.msra.mxu0 0.0
    %181 = vmatpush.msra.mxu0 0.0
    %182 = vmatpush.msra.mxu0 0.0
    %183 = vmatpush.msra.mxu0 0.0
    %184 = vmatpush.msra.mxu0 0.0
    %185 = vmatpush.msra.mxu0 0.0
    %186 = vmatpush.msra.mxu0 0.0
    %187 = vmatpush.msra.mxu0 0.0
    %188 = vmatpush.msra.mxu0 0.0
    %189 = vmatpush.msra.mxu0 0.0
    %190 = vmatpush.msra.mxu0 0.0
    %191 = vmatpush.msra.mxu0 0.0
    %192 = vmatpush.msra.mxu0 0.0
    %193 = vmatpush.msra.mxu0 0.0
    %194 = vmatpush.msra.mxu0 %v172
    %195 = vmatmul.f32.gmra.mxu0 %v177
    %v196 = vpop.f32.mrf.mxu0
    %v197 = vadd.f32 %v174, %v196
    %198 = vdwg.mxu0
    %v199 = vld [vmem:[#allocation7 + $0x90] sm:$0xff]
    %v200 = vld [vmem:[#allocation7 + $0x98] sm:$0x1]
    %v201 = vperm.slane %v200, 0
    %v203 = vsel %vm175, %v171, 0
    %205 = vmatpush.msra.mxu0 0.0
    %206 = vmatpush.msra.mxu0 0.0
    %207 = vmatpush.msra.mxu0 0.0
    %208 = vmatpush.msra.mxu0 0.0
    %209 = vmatpush.msra.mxu0 0.0
    %210 = vmatpush.msra.mxu0 0.0
    %211 = vmatpush.msra.mxu0 0.0
    %212 = vmatpush.msra.mxu0 0.0
    %213 = vmatpush.msra.mxu0 0.0
    %214 = vmatpush.msra.mxu0 0.0
    %215 = vmatpush.msra.mxu0 0.0
    %216 = vmatpush.msra.mxu0 0.0
    %217 = vmatpush.msra.mxu0 0.0
    %218 = vmatpush.msra.mxu0 0.0
    %219 = vmatpush.msra.mxu0 0.0
    %220 = vmatpush.msra.mxu0 %v199
    %221 = vmatmul.f32.gmra.mxu0 %v203
    %v222 = vpop.f32.mrf.mxu0
    %v223 = vadd.f32 %v201, %v222
    %224 = vdwg.mxu0
    %v225 = vsub.f32 %v58, %v197
    %v226 = vld [vmem:[#allocation7 + $0xa0] sm:$0xff]
    %v227 = vld [vmem:[#allocation7 + $0xa8] sm:$0xff]
    %v228 = vld [vmem:[#allocation7 + $0xb0] sm:$0x1]
    %v229 = vperm.slane %v228, 0
    %v231 = vsel %vm63, %v225, 0
    %233 = vmatpush.msra.mxu0 0.0
    %234 = vmatpush.msra.mxu0 0.0
    %235 = vmatpush.msra.mxu0 0.0
    %236 = vmatpush.msra.mxu0 0.0
    %237 = vmatpush.msra.mxu0 0.0
    %238 = vmatpush.msra.mxu0 0.0
    %239 = vmatpush.msra.mxu0 0.0
    %240 = vmatpush.msra.mxu0 0.0
    %241 = vmatpush.msra.mxu0 0.0
    %242 = vmatpush.msra.mxu0 0.0
    %243 = vmatpush.msra.mxu0 0.0
    %244 = vmatpush.msra.mxu0 0.0
    %245 = vmatpush.msra.mxu0 0.0
    %246 = vmatpush.msra.mxu0 0.0
    %247 = vmatpush.msra.mxu0 %v227
    %248 = vmatpush.msra.mxu0 %v226
    %249 = vmatmul.f32.gmra.mxu0 %v231
    %v250 = vpop.f32.mrf.mxu0
    %v251 = vadd.f32 %v229, %v250
    %252 = vdwg.mxu0
    %v253 = vmax.f32 %v251, 0.0
    %v254 = vld [vmem:[#allocation7 + $0xb8] sm:$0xff]
    %v255 = vld [vmem:[#allocation7 + $0xc0] sm:$0xff]
    %v256 = vld [vmem:[#allocation7 + $0xc8] sm:$0xff]
    %v257 = vld [vmem:[#allocation7 + $0xd0] sm:$0xff]
    %v258 = vld [vmem:[#allocation7 + $0xd8] sm:$0x1]
    %v259 = vperm.slane %v258, 0
    %v261 = vsel %vm94, %v253, 0
    %263 = vmatpush.msra.mxu0 0.0
    %264 = vmatpush.msra.mxu0 0.0
    %265 = vmatpush.msra.mxu0 0.0
    %266 = vmatpush.msra.mxu0 0.0
    %267 = vmatpush.msra.mxu0 0.0
    %268 = vmatpush.msra.mxu0 0.0
    %269 = vmatpush.msra.mxu0 0.0
    %270 = vmatpush.msra.mxu0 0.0
    %271 = vmatpush.msra.mxu0 0.0
    %272 = vmatpush.msra.mxu0 0.0
    %273 = vmatpush.msra.mxu0 0.0
    %274 = vmatpush.msra.mxu0 0.0
    %275 = vmatpush.msra.mxu0 %v257
    %276 = vmatpush.msra.mxu0 %v256
    %277 = vmatpush.msra.mxu0 %v255
    %278 = vmatpush.msra.mxu0 %v254
    %279 = vmatmul.f32.gmra.mxu0 %v261
    %v280 = vpop.f32.mrf.mxu0
    %v281 = vadd.f32 %v259, %v280
    %282 = vdwg.mxu0
    %v283 = vmax.f32 %v281, 0.0
    %v284 = vld [vmem:[#allocation7 + $0xe0] sm:$0xff]
    %v285 = vld [vmem:[#allocation7 + $0xe8] sm:$0xff]
    %v286 = vld [vmem:[#allocation7 + $0xf0] sm:$0xff]
    %v287 = vld [vmem:[#allocation7 + $0xf8] sm:$0xff]
    %v289 = vsel %vm94, %v283, 0
    %291 = vmatpush.msra.mxu0 0.0
    %292 = vmatpush.msra.mxu0 0.0
    %293 = vmatpush.msra.mxu0 0.0
    %294 = vmatpush.msra.mxu0 0.0
    %295 = vmatpush.msra.mxu0 0.0
    %296 = vmatpush.msra.mxu0 0.0
    %297 = vmatpush.msra.mxu0 0.0
    %298 = vmatpush.msra.mxu0 0.0
    %299 = vmatpush.msra.mxu0 0.0
    %300 = vmatpush.msra.mxu0 0.0
    %301 = vmatpush.msra.mxu0 0.0
    %302 = vmatpush.msra.mxu0 0.0
    %303 = vmatpush.msra.mxu0 %v287
    %304 = vmatpush.msra.mxu0 %v286
    %305 = vmatpush.msra.mxu0 %v285
    %306 = vmatpush.msra.mxu0 %v284
    %307 = vmatmul.f32.gmra.mxu0 %v289
    %v308 = vpop.f32.mrf.mxu0
    %v309 = vadd.f32 0.0, %v308
    %310 = vdwg.mxu0
    %v311 = vld [vmem:[#allocation7 + $0x100] sm:$0xff]
    %v313 = vsel %vm175, %v309, 0
    %315 = vmatpush.msra.mxu0 0.0
    %316 = vmatpush.msra.mxu0 0.0
    %317 = vmatpush.msra.mxu0 0.0
    %318 = vmatpush.msra.mxu0 0.0
    %319 = vmatpush.msra.mxu0 0.0
    %320 = vmatpush.msra.mxu0 0.0
    %321 = vmatpush.msra.mxu0 0.0
    %322 = vmatpush.msra.mxu0 0.0
    %323 = vmatpush.msra.mxu0 0.0
    %324 = vmatpush.msra.mxu0 0.0
    %325 = vmatpush.msra.mxu0 0.0
    %326 = vmatpush.msra.mxu0 0.0
    %327 = vmatpush.msra.mxu0 0.0
    %328 = vmatpush.msra.mxu0 0.0
    %329 = vmatpush.msra.mxu0 0.0
    %330 = vmatpush.msra.mxu0 %v311
    %331 = vmatmul.f32.gmra.mxu0 %v313
    %v332 = vpop.f32.mrf.mxu0
    %v333 = vadd.f32 0.0, %v332
    %334 = vdwg.mxu0
    %v335 = vld [vmem:[#allocation7 + $0x108] sm:$0xff]
    %336 = vmatpush.msra.mxu0 0.0
    %337 = vmatpush.msra.mxu0 0.0
    %338 = vmatpush.msra.mxu0 0.0
    %339 = vmatpush.msra.mxu0 0.0
    %340 = vmatpush.msra.mxu0 0.0
    %341 = vmatpush.msra.mxu0 0.0
    %342 = vmatpush.msra.mxu0 0.0
    %343 = vmatpush.msra.mxu0 0.0
    %344 = vmatpush.msra.mxu0 0.0
    %345 = vmatpush.msra.mxu0 0.0
    %346 = vmatpush.msra.mxu0 0.0
    %347 = vmatpush.msra.mxu0 0.0
    %348 = vmatpush.msra.mxu0 0.0
    %349 = vmatpush.msra.mxu0 0.0
    %350 = vmatpush.msra.mxu0 0.0
    %351 = vmatpush.msra.mxu0 %v335
    %352 = vmatmul.f32.gmra.mxu0 %v313
    %v353 = vpop.f32.mrf.mxu0
    %v354 = vadd.f32 0.0, %v353
    %355 = vdwg.mxu0
    %v356 = vsub.f32 %v225, %v333
    %v357 = vadd.f32 %v223, %v354
    %v358 = vld [vmem:[#allocation7 + $0x110] sm:$0xff]
    %v359 = vld [vmem:[#allocation7 + $0x118] sm:$0xff]
    %v360 = vld [vmem:[#allocation7 + $0x120] sm:$0x1]
    %v361 = vperm.slane %v360, 0
    %v363 = vsel %vm63, %v356, 0
    %365 = vmatpush.msra.mxu0 0.0
    %366 = vmatpush.msra.mxu0 0.0
    %367 = vmatpush.msra.mxu0 0.0
    %368 = vmatpush.msra.mxu0 0.0
    %369 = vmatpush.msra.mxu0 0.0
    %370 = vmatpush.msra.mxu0 0.0
    %371 = vmatpush.msra.mxu0 0.0
    %372 = vmatpush.msra.mxu0 0.0
    %373 = vmatpush.msra.mxu0 0.0
    %374 = vmatpush.msra.mxu0 0.0
    %375 = vmatpush.msra.mxu0 0.0
    %376 = vmatpush.msra.mxu0 0.0
    %377 = vmatpush.msra.mxu0 0.0
    %378 = vmatpush.msra.mxu0 0.0
    %379 = vmatpush.msra.mxu0 %v359
    %380 = vmatpush.msra.mxu0 %v358
    %381 = vmatmul.f32.gmra.mxu0 %v363
    %v382 = vpop.f32.mrf.mxu0
    %v383 = vadd.f32 %v361, %v382
    %384 = vdwg.mxu0
    %v385 = vmax.f32 %v383, 0.0
    %v386 = vld [vmem:[#allocation7 + $0x128] sm:$0xff]
    %v387 = vld [vmem:[#allocation7 + $0x130] sm:$0xff]
    %v388 = vld [vmem:[#allocation7 + $0x138] sm:$0xff]
    %v389 = vld [vmem:[#allocation7 + $0x140] sm:$0xff]
    %v390 = vld [vmem:[#allocation7 + $0x148] sm:$0x1]
    %v391 = vperm.slane %v390, 0
    %v393 = vsel %vm94, %v385, 0
    %395 = vmatpush.msra.mxu0 0.0
    %396 = vmatpush.msra.mxu0 0.0
    %397 = vmatpush.msra.mxu0 0.0
    %398 = vmatpush.msra.mxu0 0.0
    %399 = vmatpush.msra.mxu0 0.0
    %400 = vmatpush.msra.mxu0 0.0
    %401 = vmatpush.msra.mxu0 0.0
    %402 = vmatpush.msra.mxu0 0.0
    %403 = vmatpush.msra.mxu0 0.0
    %404 = vmatpush.msra.mxu0 0.0
    %405 = vmatpush.msra.mxu0 0.0
    %406 = vmatpush.msra.mxu0 0.0
    %407 = vmatpush.msra.mxu0 %v389
    %408 = vmatpush.msra.mxu0 %v388
    %409 = vmatpush.msra.mxu0 %v387
    %410 = vmatpush.msra.mxu0 %v386
    %411 = vmatmul.f32.gmra.mxu0 %v393
    %v412 = vpop.f32.mrf.mxu0
    %v413 = vadd.f32 %v391, %v412
    %414 = vdwg.mxu0
    %v415 = vmax.f32 %v413, 0.0
    %v416 = vld [vmem:[#allocation7 + $0x150] sm:$0xff]
    %v417 = vld [vmem:[#allocation7 + $0x158] sm:$0xff]
    %v418 = vld [vmem:[#allocation7 + $0x160] sm:$0xff]
    %v419 = vld [vmem:[#allocation7 + $0x168] sm:$0xff]
    %v421 = vsel %vm94, %v415, 0
    %423 = vmatpush.msra.mxu0 0.0
    %424 = vmatpush.msra.mxu0 0.0
    %425 = vmatpush.msra.mxu0 0.0
    %426 = vmatpush.msra.mxu0 0.0
    %427 = vmatpush.msra.mxu0 0.0
    %428 = vmatpush.msra.mxu0 0.0
    %429 = vmatpush.msra.mxu0 0.0
    %430 = vmatpush.msra.mxu0 0.0
    %431 = vmatpush.msra.mxu0 0.0
    %432 = vmatpush.msra.mxu0 0.0
    %433 = vmatpush.msra.mxu0 0.0
    %434 = vmatpush.msra.mxu0 0.0
    %435 = vmatpush.msra.mxu0 %v419
    %436 = vmatpush.msra.mxu0 %v418
    %437 = vmatpush.msra.mxu0 %v417
    %438 = vmatpush.msra.mxu0 %v416
    %439 = vmatmul.f32.gmra.mxu0 %v421
    %v440 = vpop.f32.mrf.mxu0
    %v441 = vadd.f32 0.0, %v440
    %442 = vdwg.mxu0
    %v443 = vld [vmem:[#allocation7 + $0x178] sm:$0xff]
    %v445 = vsel %vm175, %v441, 0
    %447 = vmatpush.msra.mxu0 0.0
    %448 = vmatpush.msra.mxu0 0.0
    %449 = vmatpush.msra.mxu0 0.0
    %450 = vmatpush.msra.mxu0 0.0
    %451 = vmatpush.msra.mxu0 0.0
    %452 = vmatpush.msra.mxu0 0.0
    %453 = vmatpush.msra.mxu0 0.0
    %454 = vmatpush.msra.mxu0 0.0
    %455 = vmatpush.msra.mxu0 0.0
    %456 = vmatpush.msra.mxu0 0.0
    %457 = vmatpush.msra.mxu0 0.0
    %458 = vmatpush.msra.mxu0 0.0
    %459 = vmatpush.msra.mxu0 0.0
    %460 = vmatpush.msra.mxu0 0.0
    %461 = vmatpush.msra.mxu0 0.0
    %462 = vmatpush.msra.mxu0 %v443
    %463 = vmatmul.f32.gmra.mxu0 %v445
    %v464 = vpop.f32.mrf.mxu0
    %v465 = vadd.f32 0.0, %v464
    %466 = vdwg.mxu0
    %v467 = vadd.f32 %v357, %v465
    %v468 = vld [vmem:[#allocation5] sm:$0xff]
    %v469 = vand.u32 2147483647, %v468
    %v470 = vand.u32 2147483647, %v467
    %v471 = vadd.f32 %v469, %v470
    %vm472 = vcmp.eq.f32.partialorder %v471, 0.0
    %v473 = vsel %vm472, 1, 0
    %v474 = vcvt.s32.f32 %v473
    %v475 = vsub.f32 %v468, %v467
    %v476 = vand.u32 2147483647, %v475
    %v477 = vsub.f32 1.0, %v474
    %v478 = vmul.f32 %v476, %v477
    %v479 = vadd.f32 %v471, %v474
    %v480 = vrcp.pop %v479
    %v481 = vmul.f32 %v479, %v480
    %v482 = vsub.f32 1.0, %v481
    %v483 = vmul.f32 %v480, %v482
    %v484 = vadd.f32 %v480, %v483
    %vm485 = vweird.f32 %v479
    %vm486 = vweird.f32 %v480
    %vm487 = vmor %vm485, %vm486
    %v488 = vsel %vm487, %v480, %v484
    %v489 = vand.u32 2147483647, %v479
    %vm490 = vcmp.eq.f32.partialorder %v489, 8.507059e+37
    %v491 = vand.u32 %v479, 2147483648
    %v492 = vor.u32 1.1754944e-38, %v491
    %v493 = vsel %vm490, %v492, %v488
    %v494 = vmul.f32 %v478, %v493
    %v495 = vsel %vm175, %v494, 0.0
    %496 = vadd.xlane.f32.xlu0 %v495
    %v497 = vpop.xlane.xlu0 %496
    %v498 = vrot.slane %v497, 4
    %v499 = vadd.f32 %v497, %v498
    %v500 = vrot.slane %v499, 2
    %v501 = vadd.f32 %v499, %v500
    %v502 = vrot.slane %v501, 1
    %v503 = vadd.f32 %v501, %v502
    %s504 = vtos %v503
    %v505 = vstv %s504
    %v506 = vmul.f32 %v505, 0.390625
    %vm507 = vcmask 0
    %508 = vst.msk [vmem:[#allocation8] sm:$0x1] %vm507, %v506
    // Predicated region
    $region26: #{loss_fn.1} parent=1 // pred_check
      _
    $region27: #{loss_fn.1} parent=1 // pred_check_branch
      %510 = sbr.rel (0) target = $region29
    $region28: #{loss_fn.1} parent=1 // pred_region
      %512 = vsyncadd [#allocation4], 0
      %s514 = sshll.u32 [#allocation8], 4
      %s515 = int_to_ptr.vmem [resolvable:$true] %s514
      %s516 = sshll.u32 %s3, 4
      %s517 = int_to_ptr.hbm [resolvable:$true] %s516
      %519 = dma.vmem_to_hbm [thread:$0]  %s515, 16, %s517, [#allocation4]
    $region29: #{loss_fn.1} parent=1 // pred_fallthru
      _
    // Predicated region
    $region30: #{loss_fn.1} parent=1 // pred_check
      _
    $region31: #{loss_fn.1} parent=1 // pred_check_branch
      %521 = sbr.rel (0) target = $region33
    $region32: #{loss_fn.1} parent=1 // pred_region
      %523 = dma.done [#allocation4], 16
    $region33: #{loss_fn.1} parent=1 // pred_fallthru
      _
    %524 = vsyncpa [#allocation3], 1
    %525 = vsyncpa [#allocation6], 1
    %526 = vsyncpa [#allocation4], 1

</llo_original>
